<compile_context>
chip_gen: v6e
topology: v6e:2x2x1
jax: 0.10.0
libtpu: 0.0.40
codegen_flags: <defaults>
</compile_context>

<pallas_src>
import functools
import math

import jax
import jax.numpy as jnp
from jax.experimental import pallas as pl
from jax.experimental.pallas import tpu as pltpu

LN_EPS = 1e-5  # torch.nn.LayerNorm default


def _merge_ln_reduce_kernel(x_ref, we_ref, wo_ref, aux_ref, o_ref):
    """Fused patch-merge + LayerNorm(4C) + Linear(4C -> 2C, no bias).

    x_ref  : (tb, 2, Wh, 2C)  dim1 = h-parity; lane dim = [even-w C | odd-w C]
    we_ref : (2C, Np)         gamma-folded weight slab for the even-h half
    wo_ref : (2C, Np)         gamma-folded weight slab for the odd-h half
    aux_ref: (2,  Np)         row 0 = column sums of [we;wo] (f32),
                              row 1 = beta @ W^T (f32)
    o_ref  : (tb*Wh, Np)      output tile
    """
    tb, _, wh, c2 = x_ref.shape
    rows = tb * wh
    mm_dt = we_ref.dtype

    xe = x_ref[:, 0].reshape(rows, c2)      # even-h rows: [x0 | x2] channels
    xo = x_ref[:, 1].reshape(rows, c2)      # odd-h  rows: [x1 | x3] channels

    # LayerNorm statistics over the virtual 4C channels (f32, one pass).
    xe32 = xe.astype(jnp.float32)
    xo32 = xo.astype(jnp.float32)
    inv_n = 1.0 / (2.0 * c2)
    s1 = (jnp.sum(xe32, axis=-1, keepdims=True)
          + jnp.sum(xo32, axis=-1, keepdims=True))
    s2 = (jnp.sum(xe32 * xe32, axis=-1, keepdims=True)
          + jnp.sum(xo32 * xo32, axis=-1, keepdims=True))
    mean = s1 * inv_n
    var = s2 * inv_n - mean * mean
    rstd = jax.lax.rsqrt(jnp.maximum(var, 0.0) + LN_EPS)

    # Matmul on the RAW (uncentered, unscaled) activations; LN applied in the
    # (rows, Np) epilogue.  f32 accumulation always.
    prec = (jax.lax.Precision.HIGHEST if mm_dt == jnp.float32
            else jax.lax.Precision.DEFAULT)
    acc = jnp.dot(xe.astype(mm_dt), we_ref[...],
                  preferred_element_type=jnp.float32, precision=prec)
    acc = acc + jnp.dot(xo.astype(mm_dt), wo_ref[...],
                        preferred_element_type=jnp.float32, precision=prec)

    colsum = aux_ref[0:1, :]                # (1, Np) f32
    bias = aux_ref[1:2, :]                  # (1, Np) f32
    out = (acc - mean * colsum) * rstd + bias
    o_ref[...] = out.astype(o_ref.dtype)


def _vmem_budget_and_limit():
    """Per-generation VMEM capacity -> (tile budget, scoped vmem limit)."""
    cap = 64 * 1024 * 1024                  # conservative fallback (v7x-sized)
    try:
        cap = int(pltpu.get_tpu_info().vmem_capacity_bytes)
    except Exception:
        pass
    limit = min(cap * 3 // 4, 96 * 1024 * 1024)
    budget = min(cap // 2, 64 * 1024 * 1024)
    return budget, limit


def _pick_tb(bh, wh, c2_in, n_pad, x_bytes, mm_bytes, out_bytes, budget,
             min_steps=4):
    """Largest row tile (units of Wh-wide merged rows) fitting the budget."""
    # Per merged row, for the epilogue-folded kernel:
    #   input block (both parities), double-buffered : 2 * 2*c2 * x_bytes
    #   f32 stats temporaries (xe32/xo32)            : 2*c2 * 4
    #   mm-dtype matmul inputs (worst case re-cast)  : 2*c2 * mm_bytes
    #   f32 accumulator + epilogue                   : n_pad * 4
    #   output block, double-buffered                : 2 * n_pad * out_bytes
    per_row = wh * (2 * 2 * c2_in * x_bytes
                    + 2 * c2_in * 4
                    + 2 * c2_in * mm_bytes
                    + n_pad * 4
                    + 2 * n_pad * out_bytes)
    # Single-buffered weights + aux + slack.
    fixed = 2 * c2_in * n_pad * mm_bytes + 2 * n_pad * 4 + (2 << 20)
    tb = int(max(1, (budget - fixed) // max(1, per_row)))
    tb = min(tb, bh, max(1, 8192 // max(1, wh)))     # ~8K merged rows / step
    # Keep enough grid steps for pipelining / v7x megacore.
    tb = min(tb, max(1, -(-bh // max(1, min_steps))))
    if tb < bh:
        g = 8 // math.gcd(wh, 8)        # keep tb*Wh a multiple of 8 (sublanes)
        tb = max(g, (tb // g) * g)
        tb = min(tb, bh)
    return max(1, int(tb))


@functools.partial(jax.jit, static_argnums=(1, 2),
                   static_argnames=("mm_dtype", "out_dtype", "tb"))
def patch_merging_forward(x, hlong, wlong, gamma, beta, weight, *,
                          mm_dtype=jnp.bfloat16, out_dtype=None, tb=None):
    """Reproduces PatchMerging.forward.

    x:      (B, H*W, C)
    gamma:  (4C,)     LayerNorm weight
    beta:   (4C,)     LayerNorm bias
    weight: (2C, 4C)  nn.Linear(4C, 2C, bias=False).weight (torch layout)
    returns (B, ceil(H/2)*ceil(W/2), 2C)
    """
    B, L, C = x.shape
    assert L == hlong * wlong, "input feature has wrong size"
    out_dt = x.dtype if out_dtype is None else out_dtype
    x = x.reshape(B, hlong, wlong, C)

    ph, pw = hlong % 2, wlong % 2
    if ph or pw:  # matches F.pad(x, (0,0, 0,wlong%2, 0,hlong%2))
        # TODO(synk): pad could be folded into the kernel via masked partial
        # blocks if odd spatial sizes ever matter for performance.
        x = jnp.pad(x, ((0, 0), (0, ph), (0, pw), (0, 0)))
    Hh, Wh = (hlong + ph) // 2, (wlong + pw) // 2
    BH, C2 = B * Hh, 2 * C

    # Free reshape: (B, 2Hh, 2Wh, C) -> (B*Hh, 2, Wh, 2C).  Dim 1 is the
    # h-parity; the lane dim is [even-w channels | odd-w channels].
    xr = x.reshape(BH, 2, Wh, C2)

    # ---- one-time parameter folding (fused into the same jit) --------------
    f32 = jnp.float32
    w_t = weight.astype(f32).T                       # (4C, 2C)
    w_fold = gamma.astype(f32)[:, None] * w_t        # diag(gamma) @ W^T
    # kernel channel order is [x0 | x2 | x1 | x3]; torch order is [x0|x1|x2|x3]
    perm = jnp.concatenate([jnp.arange(0, C), jnp.arange(2 * C, 3 * C),
                            jnp.arange(C, 2 * C), jnp.arange(3 * C, 4 * C)])
    w_k = w_fold[perm]                               # (4C, 2C) kernel order
    bias = beta.astype(f32) @ w_t                    # (2C,)

    n_out = 2 * C
    # Lane handling: only pad when the output is narrower than one vreg lane
    # row; otherwise write at true width (full-dim last block dim is legal)
    # and avoid the extra HBM round trip of a wrapper slice.
    n_pad = n_out if n_out >= 128 else 128
    if n_pad != n_out:
        w_k = jnp.pad(w_k, ((0, 0), (0, n_pad - n_out)))
        bias = jnp.pad(bias, (0, n_pad - n_out))
    w_e = w_k[:C2].astype(mm_dtype)                  # even-h slab (2C, Np)
    w_o = w_k[C2:].astype(mm_dtype)                  # odd-h  slab (2C, Np)
    # Column sums of the SAME (quantized) weights the MXU sees, so the
    # mean-centering identity cancels exactly.
    colsum = (jnp.sum(w_e.astype(f32), axis=0)
              + jnp.sum(w_o.astype(f32), axis=0))    # (Np,)
    aux = jnp.stack([colsum, bias], axis=0)          # (2, Np) f32

    # ---- tile size from the per-chip VMEM budget ---------------------------
    budget, limit = _vmem_budget_and_limit()
    mm_bytes = jnp.dtype(mm_dtype).itemsize
    if tb is None:
        tb = _pick_tb(BH, Wh, C2, n_pad, x.dtype.itemsize, mm_bytes,
                      jnp.dtype(out_dt).itemsize, budget)
    tb = int(tb)
    grid = (pl.cdiv(BH, tb),)

    invariant = pl.Buffered(buffer_count=1)          # single-buffer constants

    out = pl.pallas_call(
        _merge_ln_reduce_kernel,
        out_shape=jax.ShapeDtypeStruct((BH * Wh, n_pad), out_dt),
        grid_spec=pltpu.PrefetchScalarGridSpec(
            num_scalar_prefetch=0,
            grid=grid,
            in_specs=[
                # both h-parity planes in one contiguous block
                pl.BlockSpec((tb, 2, Wh, C2), lambda i: (i, 0, 0, 0)),
                # loop-invariant folded weights + (colsum, bias) row pair
                pl.BlockSpec((C2, n_pad), lambda i: (0, 0),
                             pipeline_mode=invariant),
                pl.BlockSpec((C2, n_pad), lambda i: (0, 0),
                             pipeline_mode=invariant),
                pl.BlockSpec((2, n_pad), lambda i: (0, 0),
                             pipeline_mode=invariant),
            ],
            out_specs=pl.BlockSpec((tb * Wh, n_pad), lambda i: (i, 0)),
        ),
        compiler_params=pltpu.CompilerParams(
            dimension_semantics=("parallel",),
            vmem_limit_bytes=limit),
    )(xr, w_e, w_o, aux)

    if n_pad != n_out:
        out = out[:, :n_out]
    return out.reshape(B, Hh * Wh, n_out)


def _reference_forward(x, hlong, wlong, gamma, beta, weight):
    """Pure-JAX reference (mirrors the PyTorch module exactly, all f32)."""
    B, L, C = x.shape
    x = x.reshape(B, hlong, wlong, C)
    if (hlong % 2 == 1) or (wlong % 2 == 1):
        x = jnp.pad(x, ((0, 0), (0, hlong % 2), (0, wlong % 2), (0, 0)))
    x0 = x[:, 0::2, 0::2, :]
    x1 = x[:, 1::2, 0::2, :]
    x2 = x[:, 0::2, 1::2, :]
    x3 = x[:, 1::2, 1::2, :]
    xm = jnp.concatenate([x0, x1, x2, x3], axis=-1).reshape(B, -1, 4 * C)
    mean = jnp.mean(xm, axis=-1, keepdims=True)
    var = jnp.mean((xm - mean) ** 2, axis=-1, keepdims=True)
    xn = (xm - mean) / jnp.sqrt(var + LN_EPS)
    y = xn * gamma + beta
    return y @ weight.T


if __name__ == "__main__":
    # Small shapes consistent with the module: B=2, dim C=4, H=W=16.
    B, C, H, W = 2, 4, 16, 16
    key = jax.random.PRNGKey(0)
    kx, kw, kg, kb = jax.random.split(key, 4)

    x = jax.random.normal(kx, (B, H * W, C), dtype=jnp.float32)
    # nn.Linear(4*dim, 2*dim, bias=False).weight -> (2C, 4C); LayerNorm(4C)
    weight = jax.random.normal(kw, (2 * C, 4 * C), dtype=jnp.float32) * 0.05
    gamma = 1.0 + 0.1 * jax.random.normal(kg, (4 * C,), dtype=jnp.float32)
    beta = 0.1 * jax.random.normal(kb, (4 * C,), dtype=jnp.float32)

    ref = _reference_forward(x, H, W, gamma, beta, weight)

    # 1) main path: fused gather + bf16 MXU matmul, auto-sized row tile.
    out = jax.block_until_ready(
        patch_merging_forward(x, H, W, gamma, beta, weight))
    assert out.shape == (B, (H // 2) * (W // 2), 2 * C), out.shape
    assert jnp.allclose(out, ref, atol=2e-2, rtol=2e-2), "bf16 path mismatch"

    # 2) f32-weight path, tight tolerance (structural correctness check).
    out32 = jax.block_until_ready(
        patch_merging_forward(x, H, W, gamma, beta, weight,
                              mm_dtype=jnp.float32))
    assert jnp.allclose(out32, ref, atol=2e-3, rtol=2e-3), "f32 path mismatch"

    # 3) odd spatial size (pad path) + partial last tile (grid = cdiv).
    Ho = Wo = 15
    xo = jax.random.normal(kx, (B, Ho * Wo, C), dtype=jnp.float32)
    outp = jax.block_until_ready(
        patch_merging_forward(xo, Ho, Wo, gamma, beta, weight,
                              mm_dtype=jnp.float32, tb=6))
    refp = _reference_forward(xo, Ho, Wo, gamma, beta, weight)
    assert outp.shape == refp.shape, (outp.shape, refp.shape)
    assert jnp.allclose(outp, refp, atol=2e-3, rtol=2e-3), \
        "padded/partial-tile mismatch"

    # 4) bf16 output path (halved writeback bytes for downstream bf16 users).
    outb = jax.block_until_ready(
        patch_merging_forward(x, H, W, gamma, beta, weight,
                              out_dtype=jnp.bfloat16))
    assert outb.dtype == jnp.bfloat16
    assert jnp.allclose(outb.astype(jnp.float32), ref, atol=3e-2, rtol=3e-2), \
        "bf16-output path mismatch"

    print("KERNEL_OK")
</pallas_src>

<mosaic_0001>
module attributes {stable_mosaic.version = 11 : i64} {
  func.func @_merge_ln_reduce_kernel(%arg0: i32, %arg1: memref<4x2x8x8xf32, #tpu.memory_space<vmem>>, %arg2: memref<8x128xbf16, #tpu.memory_space<vmem>>, %arg3: memref<8x128xbf16, #tpu.memory_space<vmem>>, %arg4: memref<2x128xf32, #tpu.memory_space<vmem>>, %arg5: memref<32x128xf32, #tpu.memory_space<vmem>>) attributes {dimension_semantics = [#tpu.dimension_semantics<parallel>], iteration_bounds = array<i64: 4>, scalar_prefetch = 0 : i64, scratch_operands = 0 : i64, tpu.core_type = #tpu.core_type<tc>, window_params = [{transform_indices = @transform_0, window_bounds = array<i64: 4, 2, 8, 8>}, {pipeline_mode = #tpu.pipeline_mode<synchronous>, transform_indices = @transform_1, window_bounds = array<i64: 8, 128>}, {pipeline_mode = #tpu.pipeline_mode<synchronous>, transform_indices = @transform_2, window_bounds = array<i64: 8, 128>}, {pipeline_mode = #tpu.pipeline_mode<synchronous>, transform_indices = @transform_3, window_bounds = array<i64: 2, 128>}, {transform_indices = @transform_4, window_bounds = array<i64: 32, 128>}]} {
    %c0 = arith.constant 0 : index
    %c0_0 = arith.constant 0 : index
    %c0_1 = arith.constant 0 : index
    %c0_2 = arith.constant 0 : index
    %0 = vector.load %arg1[%c0, %c0_0, %c0_1, %c0_2] : memref<4x2x8x8xf32, #tpu.memory_space<vmem>>, vector<4x1x8x8xf32>
    %1 = vector.shape_cast %0 : vector<4x1x8x8xf32> to vector<4x8x8xf32>
    %2 = vector.shape_cast %1 : vector<4x8x8xf32> to vector<32x8xf32>
    %c0_3 = arith.constant 0 : index
    %c1 = arith.constant 1 : index
    %c0_4 = arith.constant 0 : index
    %c0_5 = arith.constant 0 : index
    %3 = vector.load %arg1[%c0_3, %c1, %c0_4, %c0_5] : memref<4x2x8x8xf32, #tpu.memory_space<vmem>>, vector<4x1x8x8xf32>
    %4 = vector.shape_cast %3 : vector<4x1x8x8xf32> to vector<4x8x8xf32>
    %5 = vector.shape_cast %4 : vector<4x8x8xf32> to vector<32x8xf32>
    %cst = arith.constant dense<0.000000e+00> : vector<32xf32>
    %6 = vector.multi_reduction <add>, %2, %cst [1] : vector<32x8xf32> to vector<32xf32>
    %7 = vector.shape_cast %6 : vector<32xf32> to vector<32x1xf32>
    %cst_6 = arith.constant dense<0.000000e+00> : vector<32xf32>
    %8 = vector.multi_reduction <add>, %5, %cst_6 [1] : vector<32x8xf32> to vector<32xf32>
    %9 = vector.shape_cast %8 : vector<32xf32> to vector<32x1xf32>
    %10 = arith.addf %7, %9 : vector<32x1xf32>
    %11 = arith.mulf %2, %2 : vector<32x8xf32>
    %cst_7 = arith.constant dense<0.000000e+00> : vector<32xf32>
    %12 = vector.multi_reduction <add>, %11, %cst_7 [1] : vector<32x8xf32> to vector<32xf32>
    %13 = vector.shape_cast %12 : vector<32xf32> to vector<32x1xf32>
    %14 = arith.mulf %5, %5 : vector<32x8xf32>
    %cst_8 = arith.constant dense<0.000000e+00> : vector<32xf32>
    %15 = vector.multi_reduction <add>, %14, %cst_8 [1] : vector<32x8xf32> to vector<32xf32>
    %16 = vector.shape_cast %15 : vector<32xf32> to vector<32x1xf32>
    %17 = arith.addf %13, %16 : vector<32x1xf32>
    %cst_9 = arith.constant 6.250000e-02 : f32
    %18 = vector.broadcast %cst_9 : f32 to vector<32x1xf32>
    %19 = arith.mulf %10, %18 : vector<32x1xf32>
    %cst_10 = arith.constant 6.250000e-02 : f32
    %20 = vector.broadcast %cst_10 : f32 to vector<32x1xf32>
    %21 = arith.mulf %17, %20 : vector<32x1xf32>
    %22 = arith.mulf %19, %19 : vector<32x1xf32>
    %23 = arith.subf %21, %22 : vector<32x1xf32>
    %cst_11 = arith.constant 0.000000e+00 : f32
    %24 = vector.broadcast %cst_11 : f32 to vector<32x1xf32>
    %25 = arith.maximumf %23, %24 : vector<32x1xf32>
    %cst_12 = arith.constant 9.99999974E-6 : f32
    %26 = vector.broadcast %cst_12 : f32 to vector<32x1xf32>
    %27 = arith.addf %25, %26 : vector<32x1xf32>
    %28 = math.rsqrt %27 : vector<32x1xf32>
    %29 = arith.truncf %2 : vector<32x8xf32> to vector<32x8xbf16>
    %c0_13 = arith.constant 0 : index
    %c0_14 = arith.constant 0 : index
    %30 = vector.load %arg2[%c0_13, %c0_14] : memref<8x128xbf16, #tpu.memory_space<vmem>>, vector<8x128xbf16>
    %cst_15 = arith.constant dense<0.000000e+00> : vector<32x128xf32>
    %31 = tpu.matmul %29, %30, %cst_15 {dimension_numbers = #tpu.dot_dimension_numbers<[1], [0], [0], [1], [0, 0, 1, 1], [], []>} : vector<32x8xbf16>, vector<8x128xbf16>, vector<32x128xf32> -> vector<32x128xf32>
    %32 = arith.truncf %5 : vector<32x8xf32> to vector<32x8xbf16>
    %c0_16 = arith.constant 0 : index
    %c0_17 = arith.constant 0 : index
    %33 = vector.load %arg3[%c0_16, %c0_17] : memref<8x128xbf16, #tpu.memory_space<vmem>>, vector<8x128xbf16>
    %cst_18 = arith.constant dense<0.000000e+00> : vector<32x128xf32>
    %34 = tpu.matmul %32, %33, %cst_18 {dimension_numbers = #tpu.dot_dimension_numbers<[1], [0], [0], [1], [0, 0, 1, 1], [], []>} : vector<32x8xbf16>, vector<8x128xbf16>, vector<32x128xf32> -> vector<32x128xf32>
    %35 = arith.addf %31, %34 : vector<32x128xf32>
    %c0_19 = arith.constant 0 : index
    %c0_20 = arith.constant 0 : index
    %36 = vector.load %arg4[%c0_19, %c0_20] : memref<2x128xf32, #tpu.memory_space<vmem>>, vector<1x128xf32>
    %c1_21 = arith.constant 1 : index
    %c0_22 = arith.constant 0 : index
    %37 = vector.load %arg4[%c1_21, %c0_22] : memref<2x128xf32, #tpu.memory_space<vmem>>, vector<1x128xf32>
    %38 = vector.broadcast %19 : vector<32x1xf32> to vector<32x128xf32>
    %39 = vector.broadcast %36 : vector<1x128xf32> to vector<32x128xf32>
    %40 = arith.mulf %38, %39 : vector<32x128xf32>
    %41 = arith.subf %35, %40 : vector<32x128xf32>
    %42 = vector.broadcast %28 : vector<32x1xf32> to vector<32x128xf32>
    %43 = arith.mulf %41, %42 : vector<32x128xf32>
    %44 = vector.broadcast %37 : vector<1x128xf32> to vector<32x128xf32>
    %45 = arith.addf %43, %44 : vector<32x128xf32>
    %c0_23 = arith.constant 0 : index
    %c0_24 = arith.constant 0 : index
    %46 = vector.load %arg5[%c0_23, %c0_24] : memref<32x128xf32, #tpu.memory_space<vmem>>, vector<32x128xf32>
    tpu.vector_store %arg5[%c0_23, %c0_24], %45 {strides = array<i32>} : memref<32x128xf32, #tpu.memory_space<vmem>>, vector<32x128xf32>,
    return
  }
  func.func @transform_0(%arg0: i32) -> (i32, i32, i32, i32) {
    %c0_i32 = arith.constant 0 : i32
    %c0_i32_0 = arith.constant 0 : i32
    %c0_i32_1 = arith.constant 0 : i32
    %c0_i32_2 = arith.constant 0 : i32
    return %arg0, %c0_i32, %c0_i32_0, %c0_i32_1 : i32, i32, i32, i32
  }
  func.func @transform_1(%arg0: i32) -> (i32, i32) {
    %c0_i32 = arith.constant 0 : i32
    %c0_i32_0 = arith.constant 0 : i32
    %c0_i32_1 = arith.constant 0 : i32
    return %c0_i32, %c0_i32_0 : i32, i32
  }
  func.func @transform_2(%arg0: i32) -> (i32, i32) {
    %c0_i32 = arith.constant 0 : i32
    %c0_i32_0 = arith.constant 0 : i32
    %c0_i32_1 = arith.constant 0 : i32
    return %c0_i32, %c0_i32_0 : i32, i32
  }
  func.func @transform_3(%arg0: i32) -> (i32, i32) {
    %c0_i32 = arith.constant 0 : i32
    %c0_i32_0 = arith.constant 0 : i32
    %c0_i32_1 = arith.constant 0 : i32
    return %c0_i32, %c0_i32_0 : i32, i32
  }
  func.func @transform_4(%arg0: i32) -> (i32, i32) {
    %c0_i32 = arith.constant 0 : i32
    %c0_i32_0 = arith.constant 0 : i32
    return %arg0, %c0_i32 : i32, i32
  }
}

</mosaic_0001>

<llo_original>
// kernel: patch_merging_forward.1
$region0: #{patch_merging_forward.1}
  #allocation0 [shape = 'u32[]', space=smem, size = 0x4, offset = 0x4, fixed_abs, tag = 'smem constant byte address 0x4 - core index']
  #allocation1 [shape = 'u32[144,128]{1,0:T(1,128)}', space=vmem, size = 0x12000, scoped, tag = 'internal scratch']
  %s0 = inlined_call_operand.vmem [shape: f32[16,2,8,8], index: 0, kind: input, shape index: {}]
  %s1 = inlined_call_operand.vmem [shape: bf16[8,128], index: 1, kind: input, shape index: {}]
  %s2 = inlined_call_operand.vmem [shape: bf16[8,128], index: 2, kind: input, shape index: {}]
  %s3 = inlined_call_operand.vmem [shape: f32[2,128], index: 3, kind: input, shape index: {}]
  %s4 = inlined_call_operand.vmem [shape: f32[128,128], index: 4, kind: output, shape index: {}]
  %s5 = sld [smem:[#allocation0]]
  $region49: #{patch_merging_forward.1} parent=0
    _
  %s7 = ssub.s32 1, %s5
  %s8 = scalar_select 0, %s7, %s5
  loop: start=0, step=1, limit=6
  $region2: #{patch_merging_forward.1} parent=0 // loop_pre_header
    _
  $region3: #{patch_merging_forward.1} parent=0 // loop_header
    %s10 = sphi 0, %s14
    %p11 = scmp.ge.s32.totalorder %s10, 6
    %s20 = sphi 0, %s22
    %s23 = sphi 0, %s20
    %s24 = sphi 0, %s23
    %s40 = sphi 0, %s24
    %s44 = sphi 0, %s44
    %s46 = sphi 0, %s44
    %s47 = sphi 0, %s46
    %s61 = sphi 0, %s47
    %s65 = sphi 0, %s65
    %s67 = sphi 0, %s65
    %s68 = sphi 0, %s67
    %s82 = sphi 0, %s68
    %s86 = sphi 0, %s86
    %s88 = sphi 0, %s86
    %s89 = sphi 0, %s88
    %s103 = sphi 0, %s89
    %s109 = sphi 0, %s111
    %s112 = sphi 0, %s109
    %s113 = sphi 0, %s112
    %s129 = sphi 0, %s113
  $region4: #{patch_merging_forward.1} parent=0 // loop_header_branch
    %13 = sbr.rel (%p11) target = $region8
  $region5: #{patch_merging_forward.1} parent=0 // loop_body
    %s15 = ssub.s32 %s10, 1
    %s16 = ssub.s32 %s10, 2
    %s17 = sadd.s32 %s10, 1
    %s18 = ssub.s32 %s10, %s17
    %p19 = scmp.eq.s32.totalorder %s18, 0
    %s21 = sadd.s32 %s20, 1
    %s22 = scalar_select %p19, %s20, %s21
    %p25 = pneg %p19
    %p26 = scmp.eq.s32.totalorder %s10, 3
    %p27 = por %p25, %p26
    %p28 = scmp.ne.s32.totalorder %s20, %s23
    %p29 = scmp.eq.s32.totalorder %s10, 0
    %p30 = por %p28, %p29
    %p31 = scmp.ne.s32.totalorder %s20, %s23
    %p32 = scmp.eq.s32.totalorder %s15, 3
    %p33 = por %p31, %p32
    %p34 = scmp.ne.s32.totalorder %s23, %s24
    %p35 = scmp.eq.s32.totalorder %s15, 0
    %p36 = por %p34, %p35
    %p37 = scmp.ne.s32.totalorder %s23, %s24
    %p38 = scmp.eq.s32.totalorder %s16, 3
    %p39 = por %p37, %p38
    %p41 = scmp.ne.s32.totalorder %s24, %s40
    %p42 = scmp.eq.s32.totalorder %s16, 0
    %p43 = por %p41, %p42
    %s45 = sadd.s32 %s44, 1
    %p48 = scmp.eq.s32.totalorder %s10, 3
    %p49 = scmp.ne.s32.totalorder %s44, %s46
    %p50 = scmp.eq.s32.totalorder %s10, 0
    %p51 = por %p49, %p50
    %p52 = scmp.ne.s32.totalorder %s44, %s46
    %p53 = scmp.eq.s32.totalorder %s15, 3
    %p54 = por %p52, %p53
    %p55 = scmp.ne.s32.totalorder %s46, %s47
    %p56 = scmp.eq.s32.totalorder %s15, 0
    %p57 = por %p55, %p56
    %p58 = scmp.ne.s32.totalorder %s46, %s47
    %p59 = scmp.eq.s32.totalorder %s16, 3
    %p60 = por %p58, %p59
    %p62 = scmp.ne.s32.totalorder %s47, %s61
    %p63 = scmp.eq.s32.totalorder %s16, 0
    %p64 = por %p62, %p63
    %s66 = sadd.s32 %s65, 1
    %p69 = scmp.eq.s32.totalorder %s10, 3
    %p70 = scmp.ne.s32.totalorder %s65, %s67
    %p71 = scmp.eq.s32.totalorder %s10, 0
    %p72 = por %p70, %p71
    %p73 = scmp.ne.s32.totalorder %s65, %s67
    %p74 = scmp.eq.s32.totalorder %s15, 3
    %p75 = por %p73, %p74
    %p76 = scmp.ne.s32.totalorder %s67, %s68
    %p77 = scmp.eq.s32.totalorder %s15, 0
    %p78 = por %p76, %p77
    %p79 = scmp.ne.s32.totalorder %s67, %s68
    %p80 = scmp.eq.s32.totalorder %s16, 3
    %p81 = por %p79, %p80
    %p83 = scmp.ne.s32.totalorder %s68, %s82
    %p84 = scmp.eq.s32.totalorder %s16, 0
    %p85 = por %p83, %p84
    %s87 = sadd.s32 %s86, 1
    %p90 = scmp.eq.s32.totalorder %s10, 3
    %p91 = scmp.ne.s32.totalorder %s86, %s88
    %p92 = scmp.eq.s32.totalorder %s10, 0
    %p93 = por %p91, %p92
    %p94 = scmp.ne.s32.totalorder %s86, %s88
    %p95 = scmp.eq.s32.totalorder %s15, 3
    %p96 = por %p94, %p95
    %p97 = scmp.ne.s32.totalorder %s88, %s89
    %p98 = scmp.eq.s32.totalorder %s15, 0
    %p99 = por %p97, %p98
    %p100 = scmp.ne.s32.totalorder %s88, %s89
    %p101 = scmp.eq.s32.totalorder %s16, 3
    %p102 = por %p100, %p101
    %p104 = scmp.ne.s32.totalorder %s89, %s103
    %p105 = scmp.eq.s32.totalorder %s16, 0
    %p106 = por %p104, %p105
    %s107 = ssub.s32 %s10, %s17
    %p108 = scmp.eq.s32.totalorder %s107, 0
    %s110 = sadd.s32 %s109, 1
    %s111 = scalar_select %p108, %s109, %s110
    %p114 = pneg %p108
    %p115 = scmp.eq.s32.totalorder %s10, 3
    %p116 = por %p114, %p115
    %p117 = scmp.ne.s32.totalorder %s109, %s112
    %p118 = scmp.eq.s32.totalorder %s10, 0
    %p119 = por %p117, %p118
    %p120 = scmp.ne.s32.totalorder %s109, %s112
    %p121 = scmp.eq.s32.totalorder %s15, 3
    %p122 = por %p120, %p121
    %p123 = scmp.ne.s32.totalorder %s112, %s113
    %p124 = scmp.eq.s32.totalorder %s15, 0
    %p125 = por %p123, %p124
    %p126 = scmp.ne.s32.totalorder %s112, %s113
    %p127 = scmp.eq.s32.totalorder %s16, 3
    %p128 = por %p126, %p127
    %p130 = scmp.ne.s32.totalorder %s113, %s129
    %p131 = scmp.eq.s32.totalorder %s16, 0
    %p132 = por %p130, %p131
    %p133 = scmp.le.s32.totalorder 1, %s10
    %p134 = scmp.lt.s32.totalorder %s10, 5
    %p135 = pnand %p133, %p134
    %p136 = pneg %p135
    // Predicated region
    $region9: #{patch_merging_forward.1} parent=5 // pred_check
      _
    $region10: #{patch_merging_forward.1} parent=5 // pred_check_branch
      %138 = sbr.rel (%p135) target = $region12
    $region11: #{patch_merging_forward.1} parent=5 // pred_region
      %s139 = ssub.s32 %s10, 1
      // Predicated region
      $region13: #{patch_merging_forward.1} parent=11 // pred_check
        %p140 = pneg %p57
      $region14: #{patch_merging_forward.1} parent=11 // pred_check_branch
        %142 = sbr.rel (%p140) target = $region16
      $region15: #{patch_merging_forward.1} parent=11 // pred_region
        _
      $region16: #{patch_merging_forward.1} parent=11 // pred_fallthru
        _
      // Predicated region
      $region17: #{patch_merging_forward.1} parent=11 // pred_check
        %p143 = pneg %p78
      $region18: #{patch_merging_forward.1} parent=11 // pred_check_branch
        %145 = sbr.rel (%p143) target = $region20
      $region19: #{patch_merging_forward.1} parent=11 // pred_region
        _
      $region20: #{patch_merging_forward.1} parent=11 // pred_fallthru
        _
      // Predicated region
      $region21: #{patch_merging_forward.1} parent=11 // pred_check
        %p146 = pneg %p99
      $region22: #{patch_merging_forward.1} parent=11 // pred_check_branch
        %148 = sbr.rel (%p146) target = $region24
      $region23: #{patch_merging_forward.1} parent=11 // pred_region
        _
      $region24: #{patch_merging_forward.1} parent=11 // pred_fallthru
        _
    $region12: #{patch_merging_forward.1} parent=5 // pred_fallthru
      _
    %p149 = scmp.lt.s32.totalorder %s10, 4
    // Predicated region
    $region25: #{patch_merging_forward.1} parent=5 // pred_check
      %p150 = pneg %p149
    $region26: #{patch_merging_forward.1} parent=5 // pred_check_branch
      %152 = sbr.rel (%p150) target = $region28
    $region27: #{patch_merging_forward.1} parent=5 // pred_region
      // Predicated region
      $region29: #{patch_merging_forward.1} parent=27 // pred_check
        %p153 = pneg %p30
      $region30: #{patch_merging_forward.1} parent=27 // pred_check_branch
        %155 = sbr.rel (%p153) target = $region32
      $region31: #{patch_merging_forward.1} parent=27 // pred_region
        %s156 = smul.u32 4, %s10
        %p157 = scmp.lt.s32.totalorder %s156, 15
        %s158 = scalar_select %p157, %s156, 15
        %s159 = smul.addr %s158, 2
        %s160 = smul.addr %s159, 8
        %s161 = scalar_lea.vmem %s0, %s160
        %s162 = smul.u32 4, %s10
      $region32: #{patch_merging_forward.1} parent=27 // pred_fallthru
        _
    $region28: #{patch_merging_forward.1} parent=5 // pred_fallthru
      _
    %p163 = scmp.le.s32.totalorder 1, %s10
    %p164 = scmp.lt.s32.totalorder %s10, 5
    %p165 = pnand %p163, %p164
    %p166 = pneg %p165
    // Predicated region
    $region33: #{patch_merging_forward.1} parent=5 // pred_check
      _
    $region34: #{patch_merging_forward.1} parent=5 // pred_check_branch
      %168 = sbr.rel (%p165) target = $region36
    $region35: #{patch_merging_forward.1} parent=5 // pred_region
      %s169 = ssub.s32 %s10, 1
      %s170 = smul.u32 4, %s15
      %p171 = scmp.lt.s32.totalorder %s170, 15
      %s172 = scalar_select %p171, %s170, 15
      %s173 = smul.addr %s172, 2
      %s174 = smul.addr %s173, 8
      %s175 = scalar_lea.vmem %s0, %s174
      %p176 = pneg %p36
      %p177 = pneg %p33
      %p178 = pneg %p57
      %p179 = pneg %p54
      %p180 = pneg %p78
      %p181 = pneg %p75
      %p182 = pneg %p99
      %p183 = pneg %p96
      %p184 = pneg %p125
      %p185 = pneg %p122
      %s186 = smul.u32 4, %s15
      %p187 = scmp.lt.s32.totalorder %s186, 15
      %s188 = scalar_select %p187, %s186, 15
      %s189 = smul.addr %s188, 8
      %s190 = scalar_lea.vmem %s4, %s189
      %s191 = smul.u32 4, %s15
      %p192 = scmp.lt.s32.totalorder %s191, 15
      %s193 = scalar_select %p192, %s191, 15
      %s194 = smul.addr %s193, 2
      %s195 = smul.addr %s194, 8
      %s196 = scalar_lea.vmem %s0, %s195
      %s197 = smul.u32 4, %s15
      %s198 = smul.u32 4, %s15
      %p199 = scmp.lt.s32.totalorder %s198, 15
      %s200 = scalar_select %p199, %s198, 15
      %s201 = smul.addr %s200, 8
      %s202 = scalar_lea.vmem %s4, %s201
      %s203 = smul.u32 4, %s15
      %v205 = vld [vmem:[%s196] sm:$0xff]
      %v206 = vld [vmem:[%s196 + $0x10] sm:$0xff]
      %v207 = vld [vmem:[%s196 + $0x20] sm:$0xff]
      %v208 = vld [vmem:[%s196 + $0x30] sm:$0xff]
      %s209 = scalar_lea.vmem %s196, 8
      %v210 = vld [vmem:[%s209] sm:$0xff]
      %v211 = vld [vmem:[%s209 + $0x10] sm:$0xff]
      %v212 = vld [vmem:[%s209 + $0x20] sm:$0xff]
      %v213 = vld [vmem:[%s209 + $0x30] sm:$0xff]
      %vm214 = vcmask 64512
      %v215 = vsel %vm214, %v205, 0.0
      %216 = vadd.xlane.f32.xlu0 %v215
      %v217 = vpop.xlane.xlu0 %216
      %v218 = vsel %vm214, %v206, 0.0
      %219 = vadd.xlane.f32.xlu0 %v218
      %v220 = vpop.xlane.xlu0 %219
      %v221 = vsel %vm214, %v207, 0.0
      %222 = vadd.xlane.f32.xlu0 %v221
      %v223 = vpop.xlane.xlu0 %222
      %v224 = vsel %vm214, %v208, 0.0
      %225 = vadd.xlane.f32.xlu0 %v224
      %v226 = vpop.xlane.xlu0 %225
      %v227 = vsel %vm214, %v210, 0.0
      %228 = vadd.xlane.f32.xlu0 %v227
      %v229 = vpop.xlane.xlu0 %228
      %v230 = vsel %vm214, %v211, 0.0
      %231 = vadd.xlane.f32.xlu0 %v230
      %v232 = vpop.xlane.xlu0 %231
      %v233 = vsel %vm214, %v212, 0.0
      %234 = vadd.xlane.f32.xlu0 %v233
      %v235 = vpop.xlane.xlu0 %234
      %v236 = vsel %vm214, %v213, 0.0
      %237 = vadd.xlane.f32.xlu0 %v236
      %v238 = vpop.xlane.xlu0 %237
      %v239 = vadd.f32 %v217, %v229
      %v240 = vadd.f32 %v220, %v232
      %v241 = vadd.f32 %v223, %v235
      %v242 = vadd.f32 %v226, %v238
      %v243 = vmul.f32 %v205, %v205
      %v244 = vmul.f32 %v206, %v206
      %v245 = vmul.f32 %v207, %v207
      %v246 = vmul.f32 %v208, %v208
      %v247 = vsel %vm214, %v243, 0.0
      %248 = vadd.xlane.f32.xlu0 %v247
      %v249 = vpop.xlane.xlu0 %248
      %v250 = vsel %vm214, %v244, 0.0
      %251 = vadd.xlane.f32.xlu0 %v250
      %v252 = vpop.xlane.xlu0 %251
      %v253 = vsel %vm214, %v245, 0.0
      %254 = vadd.xlane.f32.xlu0 %v253
      %v255 = vpop.xlane.xlu0 %254
      %v256 = vsel %vm214, %v246, 0.0
      %257 = vadd.xlane.f32.xlu0 %v256
      %v258 = vpop.xlane.xlu0 %257
      %v259 = vmul.f32 %v210, %v210
      %v260 = vmul.f32 %v211, %v211
      %v261 = vmul.f32 %v212, %v212
      %v262 = vmul.f32 %v213, %v213
      %v263 = vsel %vm214, %v259, 0.0
      %264 = vadd.xlane.f32.xlu0 %v263
      %v265 = vpop.xlane.xlu0 %264
      %v266 = vsel %vm214, %v260, 0.0
      %267 = vadd.xlane.f32.xlu0 %v266
      %v268 = vpop.xlane.xlu0 %267
      %v269 = vsel %vm214, %v261, 0.0
      %270 = vadd.xlane.f32.xlu0 %v269
      %v271 = vpop.xlane.xlu0 %270
      %v272 = vsel %vm214, %v262, 0.0
      %273 = vadd.xlane.f32.xlu0 %v272
      %v274 = vpop.xlane.xlu0 %273
      %v275 = vadd.f32 %v249, %v265
      %v276 = vadd.f32 %v252, %v268
      %v277 = vadd.f32 %v255, %v271
      %v278 = vadd.f32 %v258, %v274
      %v279 = vmul.f32 %v239, 0.0625
      %v280 = vmul.f32 %v240, 0.0625
      %v281 = vmul.f32 %v241, 0.0625
      %v282 = vmul.f32 %v242, 0.0625
      %v283 = vmul.f32 %v275, 0.0625
      %v284 = vmul.f32 %v276, 0.0625
      %v285 = vmul.f32 %v277, 0.0625
      %v286 = vmul.f32 %v278, 0.0625
      %v287 = vmul.f32 %v279, %v279
      %v288 = vmul.f32 %v280, %v280
      %v289 = vmul.f32 %v281, %v281
      %v290 = vmul.f32 %v282, %v282
      %v291 = vsub.f32 %v283, %v287
      %v292 = vsub.f32 %v284, %v288
      %v293 = vsub.f32 %v285, %v289
      %v294 = vsub.f32 %v286, %v290
      %v295 = vmax.f32 %v291, 0.0
      %v296 = vmax.f32 %v292, 0.0
      %v297 = vmax.f32 %v293, 0.0
      %v298 = vmax.f32 %v294, 0.0
      %v299 = vadd.f32 %v295, 1e-05
      %v300 = vadd.f32 %v296, 1e-05
      %v301 = vadd.f32 %v297, 1e-05
      %v302 = vadd.f32 %v298, 1e-05
      %v303 = vrsqrt.pop %v299
      %v304 = vrsqrt.pop %v300
      %v305 = vrsqrt.pop %v301
      %v306 = vrsqrt.pop %v302
      %v307 = vpack.c.bf16 %v206, %v205
      %v308 = vpack.c.bf16 %v208, %v207
      %v309 = vld [vmem:[%s1] sm:$0xf]
      %v310 = vpack.c.bf16 %v211, %v210
      %v311 = vpack.c.bf16 %v213, %v212
      %v312 = vld [vmem:[%s2] sm:$0xf]
      %v314 = vsel %vm214, %v310, 0
      %v317 = vsel %vm214, %v311, 0
      %vm319 = vcmask 1043456
      %v321 = vsel %vm319, %v312, 0
      %323 = vmatprep.subr.bf16.mxu0 0
      %324 = vmatpush1.bf16.msra.mxu0 0
      %325 = vmatprep.subr.bf16.mxu0 0
      %326 = vmatpush1.bf16.msra.mxu0 0
      %327 = vmatprep.subr.bf16.mxu0 0
      %328 = vmatpush1.bf16.msra.mxu0 0
      %329 = vmatprep.subr.bf16.mxu0 0
      %330 = vmatpush1.bf16.msra.mxu0 0
      %331 = vmatprep.subr.bf16.mxu0 0
      %332 = vmatpush1.bf16.msra.mxu0 0
      %333 = vmatprep.subr.bf16.mxu0 0
      %334 = vmatpush1.bf16.msra.mxu0 0
      %335 = vmatprep.subr.bf16.mxu0 0
      %336 = vmatpush1.bf16.msra.mxu0 0
      %337 = vmatprep.subr.bf16.mxu0 0
      %338 = vmatpush1.bf16.msra.mxu0 %v321
      %339 = vmatprep.subr.bf16.mxu0 0
      %340 = vmatpush2.bf16.msra.mxu0 0
      %341 = vmatprep.subr.bf16.mxu0 0
      %342 = vmatpush2.bf16.msra.mxu0 0
      %343 = vmatprep.subr.bf16.mxu0 0
      %344 = vmatpush2.bf16.msra.mxu0 0
      %345 = vmatprep.subr.bf16.mxu0 0
      %346 = vmatpush2.bf16.msra.mxu0 0
      %347 = vmatprep.subr.bf16.mxu0 0
      %348 = vmatpush2.bf16.msra.mxu0 0
      %349 = vmatprep.subr.bf16.mxu0 0
      %350 = vmatpush2.bf16.msra.mxu0 0
      %351 = vmatprep.subr.bf16.mxu0 0
      %352 = vmatpush2.bf16.msra.mxu0 0
      %353 = vmatprep.subr.bf16.mxu0 0
      %354 = vmatpush2.bf16.msra.mxu0 0
      %355 = vmatprep.mubr.bf16.mxu0 0
      %356 = vmatmul.mubr.bf16.gmra.mxu0 %v314
      %v357 = vpop.f32.mrf.mxu0
      %v358 = vadd.f32 0.0, %v357
      %v359 = vpop.f32.mrf.mxu0
      %v360 = vpop.f32.mrf.mxu0
      %v361 = vadd.f32 0.0, %v360
      %v362 = vpop.f32.mrf.mxu0
      %363 = vmatprep.mubr.bf16.mxu0 0
      %364 = vmatmul.mubr.bf16.gmra.mxu0 %v317
      %v365 = vpop.f32.mrf.mxu0
      %v366 = vadd.f32 0.0, %v365
      %v367 = vpop.f32.mrf.mxu0
      %v368 = vpop.f32.mrf.mxu0
      %v369 = vadd.f32 0.0, %v368
      %v370 = vpop.f32.mrf.mxu0
      %371 = vdwg.mxu0
      %v373 = vsel %vm214, %v307, 0
      %v376 = vsel %vm214, %v308, 0
      %v379 = vsel %vm319, %v309, 0
      %381 = vmatprep.subr.bf16.mxu0 0
      %382 = vmatpush1.bf16.msra.mxu0 0
      %383 = vmatprep.subr.bf16.mxu0 0
      %384 = vmatpush1.bf16.msra.mxu0 0
      %385 = vmatprep.subr.bf16.mxu0 0
      %386 = vmatpush1.bf16.msra.mxu0 0
      %387 = vmatprep.subr.bf16.mxu0 0
      %388 = vmatpush1.bf16.msra.mxu0 0
      %389 = vmatprep.subr.bf16.mxu0 0
      %390 = vmatpush1.bf16.msra.mxu0 0
      %391 = vmatprep.subr.bf16.mxu0 0
      %392 = vmatpush1.bf16.msra.mxu0 0
      %393 = vmatprep.subr.bf16.mxu0 0
      %394 = vmatpush1.bf16.msra.mxu0 0
      %395 = vmatprep.subr.bf16.mxu0 0
      %396 = vmatpush1.bf16.msra.mxu0 %v379
      %397 = vmatprep.subr.bf16.mxu0 0
      %398 = vmatpush2.bf16.msra.mxu0 0
      %399 = vmatprep.subr.bf16.mxu0 0
      %400 = vmatpush2.bf16.msra.mxu0 0
      %401 = vmatprep.subr.bf16.mxu0 0
      %402 = vmatpush2.bf16.msra.mxu0 0
      %403 = vmatprep.subr.bf16.mxu0 0
      %404 = vmatpush2.bf16.msra.mxu0 0
      %405 = vmatprep.subr.bf16.mxu0 0
      %406 = vmatpush2.bf16.msra.mxu0 0
      %407 = vmatprep.subr.bf16.mxu0 0
      %408 = vmatpush2.bf16.msra.mxu0 0
      %409 = vmatprep.subr.bf16.mxu0 0
      %410 = vmatpush2.bf16.msra.mxu0 0
      %411 = vmatprep.subr.bf16.mxu0 0
      %412 = vmatpush2.bf16.msra.mxu0 0
      %413 = vmatprep.mubr.bf16.mxu0 0
      %414 = vmatmul.mubr.bf16.gmra.mxu0 %v373
      %v415 = vpop.f32.mrf.mxu0
      %v416 = vadd.f32 %v358, %v415
      %v417 = vpop.f32.mrf.mxu0
      %v418 = vpop.f32.mrf.mxu0
      %v419 = vadd.f32 %v361, %v418
      %v420 = vpop.f32.mrf.mxu0
      %421 = vmatprep.mubr.bf16.mxu0 0
      %422 = vmatmul.mubr.bf16.gmra.mxu0 %v376
      %v423 = vpop.f32.mrf.mxu0
      %v424 = vadd.f32 %v366, %v423
      %v425 = vpop.f32.mrf.mxu0
      %v426 = vpop.f32.mrf.mxu0
      %v427 = vadd.f32 %v369, %v426
      %v428 = vpop.f32.mrf.mxu0
      %429 = vdwg.mxu0
      %v430 = vld [vmem:[%s3] sm:$0x1]
      %v431 = vld [vmem:[%s3 + $0x1] sm:$0x1]
      %v432 = vlaneseq
      %v433 = vshrl.u32 %v432, 7
      %v434 = vsub.s32 0, %v433
      %v435 = vrot.slane %v430, %v434
      %v436 = vmul.f32 %v279, %v435
      %v437 = vmul.f32 %v280, %v435
      %v438 = vmul.f32 %v281, %v435
      %v439 = vmul.f32 %v282, %v435
      %v440 = vsub.f32 %v416, %v436
      %v441 = vsub.f32 %v419, %v437
      %v442 = vsub.f32 %v424, %v438
      %v443 = vsub.f32 %v427, %v439
      %v444 = vmul.f32 %v440, %v303
      %v445 = vmul.f32 %v441, %v304
      %v446 = vmul.f32 %v442, %v305
      %v447 = vmul.f32 %v443, %v306
      %v448 = vlaneseq
      %v449 = vshrl.u32 %v448, 7
      %v450 = vsub.s32 0, %v449
      %v451 = vrot.slane %v431, %v450
      %v452 = vadd.f32 %v444, %v451
      %v453 = vadd.f32 %v445, %v451
      %v454 = vadd.f32 %v446, %v451
      %v455 = vadd.f32 %v447, %v451
      %456 = vst [vmem:[%s202] sm:$0xff] %v452
      %457 = vst [vmem:[%s202 + $0x8] sm:$0xff] %v453
      %458 = vst [vmem:[%s202 + $0x10] sm:$0xff] %v454
      %459 = vst [vmem:[%s202 + $0x18] sm:$0xff] %v455
      %s460 = smul.u32 4, %s15
      %p461 = scmp.lt.s32.totalorder %s460, 15
      %s462 = scalar_select %p461, %s460, 15
      %s463 = smul.addr %s462, 8
      %s464 = scalar_lea.vmem %s4, %s463
      // Predicated region
      $region37: #{patch_merging_forward.1} parent=35 // pred_check
        %p465 = pneg %p122
      $region38: #{patch_merging_forward.1} parent=35 // pred_check_branch
        %467 = sbr.rel (%p465) target = $region40
      $region39: #{patch_merging_forward.1} parent=35 // pred_region
        %s468 = smul.u32 4, %s15
      $region40: #{patch_merging_forward.1} parent=35 // pred_fallthru
        _
    $region36: #{patch_merging_forward.1} parent=5 // pred_fallthru
      _
    %p469 = scmp.le.s32.totalorder 2, %s10
    // Predicated region
    $region41: #{patch_merging_forward.1} parent=5 // pred_check
      %p470 = pneg %p469
    $region42: #{patch_merging_forward.1} parent=5 // pred_check_branch
      %472 = sbr.rel (%p470) target = $region44
    $region43: #{patch_merging_forward.1} parent=5 // pred_region
      %s473 = ssub.s32 %s10, 2
      // Predicated region
      $region45: #{patch_merging_forward.1} parent=43 // pred_check
        %p474 = pneg %p128
      $region46: #{patch_merging_forward.1} parent=43 // pred_check_branch
        %476 = sbr.rel (%p474) target = $region48
      $region47: #{patch_merging_forward.1} parent=43 // pred_region
        %s477 = smul.u32 4, %s16
        %p478 = scmp.lt.s32.totalorder %s477, 15
        %s479 = scalar_select %p478, %s477, 15
        %s480 = smul.addr %s479, 8
        %s481 = scalar_lea.vmem %s4, %s480
      $region48: #{patch_merging_forward.1} parent=43 // pred_fallthru
        _
    $region44: #{patch_merging_forward.1} parent=5 // pred_fallthru
      _
  $region6: #{patch_merging_forward.1} parent=0 // loop_footer
    %s14 = sadd.s32 1, %s10
  $region7: #{patch_merging_forward.1} parent=0 // loop_footer_branch
    %9 = sbr.rel target = $region3
  $region8: #{patch_merging_forward.1} parent=0 // loop_exit
    _

</llo_original>
